<compile_context>
chip_gen: v6e
topology: v6e:2x2x1
jax: 0.10.0
libtpu: 0.0.40
codegen_flags: <defaults>
</compile_context>

<pallas_src>
import numpy as np
import jax
import jax.numpy as jnp
from jax.experimental import pallas as pl
from jax.experimental.pallas import tpu as pltpu


# ----------------------------- recat (host-side glue) -----------------------------
def _feature_order(num_splits: int, stagger: int = 1):
    return [x + num_splits // stagger * y
            for x in range(num_splits // stagger)
            for y in range(stagger)]


def _get_recat(local_split: int, num_splits: int, stagger: int = 1):
    """Port of torchrec _get_recat (non-variable-batch path)."""
    if local_split == 0:
        return None
    feature_order = _feature_order(num_splits, stagger)
    recat = []
    for i in range(local_split):
        for j in feature_order:
            recat.append(i + j * local_split)
    return np.asarray(recat, dtype=np.int32)


# ----------------------------- Pallas kernels -----------------------------
def _build_direct_a2a_kernel(schedule, bc, pool):
    """Direct HBM->HBM slab copies (no VMEM staging).

    schedule: static list of (src_row_start, dst_row_start, dst_col_start, rows)
              in the flattened (world*F_total, bc) input / (local_split, world*bc)
              output views.  Up to `pool` DMAs are kept in flight using a
              semaphore pool; a slot is only recycled after its previous copy
              has been waited, so all descriptors are independent.
    """
    n = len(schedule)

    def kernel(val_hbm, out_hbm, sems):
        def cp(t):
            s_row, d_row, d_col, rows = schedule[t]
            return pltpu.make_async_copy(
                val_hbm.at[pl.ds(s_row, rows), :],
                out_hbm.at[pl.ds(d_row, rows), pl.ds(d_col, bc)],
                sems.at[t % pool],
            )

        for t in range(n):
            if t >= pool:
                # Recycle this semaphore slot: its previous copy must land first.
                cp(t - pool).wait()
            cp(t).start()
        # Drain the still-outstanding copies.
        for t in range(max(0, n - pool), n):
            cp(t).wait()

    return kernel


def _build_staged_a2a_kernel(bands, src_bases, bc, n_buf):
    """VMEM-staged copy with coalesced contiguous writebacks (small-bc path).

    bands:     static list of (dst_row_start, rows) output row-bands.
    src_bases: static per-destination-column-block source row bases (one per
               entry of feature_order, i.e. per source rank, stagger folded in).

    For each band: `world` contiguous HBM->VMEM reads land at different column
    offsets of one (rows, world*bc) staging slab, then ONE fully contiguous
    VMEM->HBM write emits the band.  n_buf-deep buffering keeps a read stream
    and a write stream continuously outstanding.
    """
    n_bands = len(bands)
    world = len(src_bases)
    NB = n_buf  # caller guarantees 1 <= NB <= n_bands

    def kernel(val_hbm, out_hbm, vbuf, rd_sems, wr_sems):
        def rd(b, idx):
            r0, rows = bands[b]
            slot = b % NB
            return pltpu.make_async_copy(
                val_hbm.at[pl.ds(src_bases[idx] + r0, rows), :],
                vbuf.at[slot, pl.ds(0, rows), pl.ds(idx * bc, bc)],
                rd_sems.at[slot, idx],
            )

        def wb(b):
            r0, rows = bands[b]
            slot = b % NB
            return pltpu.make_async_copy(
                vbuf.at[slot, pl.ds(0, rows), :],
                out_hbm.at[pl.ds(r0, rows), :],
                wr_sems.at[slot],
            )

        # Prime the pipeline: reads for the first NB-1 bands.
        for b in range(min(NB - 1, n_bands)):
            for idx in range(world):
                rd(b, idx).start()

        for b in range(n_bands):
            nxt = b + NB - 1
            if nxt < n_bands:
                if b >= 1:
                    # WAR hazard guard: band `nxt` reuses slot (b-1) % NB; its
                    # previous occupant's writeback must land before the new
                    # reads overwrite the buffer.  Do NOT move the reads above
                    # this wait.
                    wb(b - 1).wait()
                for idx in range(world):
                    rd(nxt, idx).start()
            for idx in range(world):
                rd(b, idx).wait()
            wb(b).start()

        # Drain writebacks not waited inside the loop (the last NB bands).
        for b in range(n_bands - NB, n_bands):
            wb(b).wait()

    return kernel


# ----------------------------- wrapper -----------------------------
def kjt_all_to_all_forward(all_lengths, all_values, splits, rank, stagger=1,
                           max_tile_bytes=8 * 1024 * 1024,
                           n_buf=3,
                           direct_min_run_bytes=2048,
                           max_dma_in_flight=8):
    """
    all_lengths: (world, F_total, batch)      int32   -- every rank's KJT lengths
    all_values:  (world, F_total, batch, L)   float32 -- every rank's KJT values (fixed-capacity bags)
    splits:      list[int] of len world       -- features destined to each rank
    Returns the post-AllToAll, recat-ordered lengths/values for `rank`, plus metadata
    that the splits-AllToAll would have produced (computed as host-side glue).
    """
    world, f_total, batch = all_lengths.shape
    cap = all_values.shape[-1]
    assert len(splits) == world and sum(splits) == f_total
    assert all_values.shape[:3] == (world, f_total, batch)

    cumsum = np.concatenate([[0], np.cumsum(splits)]).astype(np.int64)
    c0 = int(cumsum[rank])
    local_split = int(splits[rank])
    bc = batch * cap
    vdtype = all_values.dtype
    ldtype = all_lengths.dtype
    itemsize = np.dtype(vdtype).itemsize

    # --- splits AllToAll (SplitsAllToAllAwaitable): pure scalar metadata, host glue ---
    lengths_output_splits = [local_split * batch for _ in range(world)]
    stride_per_rank = [batch] * world
    # TODO(synk): truly jagged values would need the exchanged lengths to size the
    # values AllToAll; with fixed-capacity bags the splits are static.

    if local_split == 0:
        return {
            "lengths": jnp.zeros((0, world * batch), ldtype),
            "values": jnp.zeros((0, world * batch, cap), vdtype),
            "row_ids": jnp.zeros((0,), jnp.int32),
            "lengths_output_splits": lengths_output_splits,
            "stride_per_rank": stride_per_rank,
        }

    feature_order = _feature_order(world, stagger)
    recat = _get_recat(local_split, world, stagger)           # recat[k] = i + src*local_split

    # ---------------- lengths: tiny -> plain XLA gather outside the DMA pipeline ----------------
    feat_i = recat % local_split
    src_rank = recat // local_split
    row_ids = jnp.asarray(
        (src_rank.astype(np.int64) * f_total + c0 + feat_i).astype(np.int32))
    len_flat = all_lengths.reshape(world * f_total, batch)
    out_lengths = jnp.take(len_flat, row_ids, axis=0).reshape(local_split, world * batch)

    # ---------------- values: lane-dense 2-D layout, per-source-rank contiguous slabs -----------
    # Row-major flatten is free; rows destined to this rank from source rank w start at
    # w*f_total + c0 and are `local_split` contiguous rows of bc elements.
    # NOTE: best DMA efficiency when bc (=batch*cap) is a multiple of 128 elements.
    val2d = all_values.reshape(world * f_total, bc)
    out_shape = jax.ShapeDtypeStruct((local_split, world * bc), vdtype)
    payload_bytes = world * local_split * bc * itemsize
    cost = pl.CostEstimate(flops=0, transcendentals=0, bytes_accessed=2 * payload_bytes)

    # Per-destination-column-block source row bases (stagger folded in): output
    # column block idx holds the values coming from source rank feature_order[idx].
    src_bases = [src * f_total + c0 for src in feature_order]

    # Path selection: direct HBM->HBM when the per-row contiguous run is already
    # reasonably long, OR when a single staged band (world*bc elements/row) would
    # not fit the VMEM budget (keeps the VMEM bound honest on every generation).
    use_direct = (bc * itemsize >= direct_min_run_bytes) or \
                 (world * bc * itemsize > max_tile_bytes)

    if use_direct:
        # ---- direct HBM->HBM slab copies, no staging, sem pool of in-flight DMAs ----
        dr = max(1, min(local_split, max_tile_bytes // max(1, bc * itemsize)))
        schedule = []
        for idx, src_base in enumerate(src_bases):
            dst_col = idx * bc
            r0 = 0
            while r0 < local_split:
                rows = min(dr, local_split - r0)
                schedule.append((src_base + r0, r0, dst_col, rows))
                r0 += rows
        pool = max(1, min(max_dma_in_flight, len(schedule)))
        kernel = _build_direct_a2a_kernel(schedule, bc, pool)
        out2d = pl.pallas_call(
            kernel,
            out_shape=out_shape,
            in_specs=[pl.BlockSpec(memory_space=pl.ANY)],
            out_specs=pl.BlockSpec(memory_space=pl.ANY),
            scratch_shapes=[pltpu.SemaphoreType.DMA((pool,))],
            cost_estimate=cost,
        )(val2d)
    else:
        # ---- small-bc path: VMEM staging with coalesced contiguous writebacks ----
        wbc = world * bc
        tr = max(1, min(local_split, max_tile_bytes // max(1, wbc * itemsize)))
        bands = []
        r0 = 0
        while r0 < local_split:
            rows = min(tr, local_split - r0)
            bands.append((r0, rows))
            r0 += rows
        nb = max(1, min(n_buf, len(bands)))
        kernel = _build_staged_a2a_kernel(bands, src_bases, bc, nb)
        staging_bytes = nb * tr * wbc * itemsize
        vmem_limit = max(32 * 1024 * 1024, staging_bytes + (8 << 20))
        out2d = pl.pallas_call(
            kernel,
            out_shape=out_shape,
            in_specs=[pl.BlockSpec(memory_space=pl.ANY)],
            out_specs=pl.BlockSpec(memory_space=pl.ANY),
            scratch_shapes=[
                pltpu.VMEM((nb, tr, wbc), vdtype),        # nb-deep row-band staging
                pltpu.SemaphoreType.DMA((nb, world)),     # HBM -> VMEM sems (slot, col-block)
                pltpu.SemaphoreType.DMA((nb,)),           # VMEM -> HBM sems (per slot)
            ],
            compiler_params=pltpu.CompilerParams(vmem_limit_bytes=vmem_limit),
            cost_estimate=cost,
        )(val2d)

    # Final KJT view for this rank: values flattened key-major with stride = world*batch
    # (stagger already folded into the slab schedule).
    out_values = out2d.reshape(local_split, world * batch, cap)
    return {
        "lengths": out_lengths,
        "values": out_values,
        "row_ids": row_ids,
        "lengths_output_splits": lengths_output_splits,
        "stride_per_rank": stride_per_rank,
    }


# ----------------------------- test harness -----------------------------
def _make_inputs(key, world, f_total, batch, cap):
    k_len, k_val = jax.random.split(key)
    all_lengths = jax.random.randint(k_len, (world, f_total, batch), 0, cap + 1, dtype=jnp.int32)
    all_values = jax.random.normal(k_val, (world, f_total, batch, cap), dtype=jnp.float32)
    return all_lengths, all_values


def _run_and_check(all_lengths, all_values, splits, rank, stagger):
    world, f_total, batch = all_lengths.shape
    cap = all_values.shape[-1]
    out = kjt_all_to_all_forward(all_lengths, all_values, splits, rank, stagger=stagger)
    jax.block_until_ready(out["values"])

    row_ids = np.asarray(out["row_ids"])
    ref_len = np.asarray(all_lengths).reshape(world * f_total, batch)[row_ids].reshape(
        splits[rank], world * batch)
    ref_val = np.asarray(all_values).reshape(world * f_total, batch, cap)[row_ids].reshape(
        splits[rank], world * batch, cap)
    np.testing.assert_array_equal(np.asarray(out["lengths"]), ref_len)
    np.testing.assert_allclose(np.asarray(out["values"]), ref_val, rtol=0, atol=0)
    assert out["lengths"].shape == (splits[rank], world * batch)
    assert out["values"].shape == (splits[rank], world * batch, cap)
    return out


if __name__ == "__main__":
    # recat sanity (docstring examples from torchrec _get_recat).
    assert _get_recat(2, 4, 1).tolist() == [0, 2, 4, 6, 1, 3, 5, 7]
    assert _get_recat(2, 4, 2).tolist() == [0, 4, 2, 6, 1, 5, 3, 7]
    assert _get_recat(0, 4, 2) is None

    key = jax.random.PRNGKey(0)
    k0, k1, k2 = jax.random.split(key, 3)

    # Config A: 2 ranks, keys ['A','B','C'], splits=[2,1], small bc (512 B)
    # -> VMEM-staged path with coalesced row-band writebacks.
    WORLD, SPLITS, BATCH, CAP, RANK = 2, [2, 1], 8, 16, 0
    KEYS = ["A", "B", "C"]
    la, va = _make_inputs(k0, WORLD, sum(SPLITS), BATCH, CAP)
    _run_and_check(la, va, SPLITS, RANK, stagger=1)
    local_keys = KEYS[sum(SPLITS[:RANK]): sum(SPLITS[:RANK + 1])]
    assert local_keys == ["A", "B"]

    # Config B: same topology, larger bags (bc = 2048 B) -> direct HBM->HBM path.
    lb, vb = _make_inputs(k1, 2, 3, 8, 64)
    _run_and_check(lb, vb, [2, 1], 0, stagger=1)

    # Config C: 4 ranks with stagger=2 (TWRW-style reorder), staged path.
    SPL_C = [1, 2, 1, 2]
    lc, vc = _make_inputs(k2, 4, sum(SPL_C), 4, 8)
    _run_and_check(lc, vc, SPL_C, 1, stagger=2)

    print("KERNEL_OK")
</pallas_src>

<mosaic_0001>
module attributes {stable_mosaic.version = 11 : i64} {
  func.func @kernel(%arg0: memref<6x128xf32, #tpu.memory_space<any>>, %arg1: memref<2x256xf32, #tpu.memory_space<any>>, %arg2: memref<1x2x256xf32, #tpu.memory_space<vmem>>, %arg3: memref<1x2x!tpu.dma_semaphore, #tpu.memory_space<semaphore_mem>>, %arg4: memref<1x!tpu.dma_semaphore, #tpu.memory_space<semaphore_mem>>) attributes {dimension_semantics = [], scalar_prefetch = 0 : i64, scratch_operands = 3 : i64, tpu.core_type = #tpu.core_type<tc>} {
    %c0_i32 = arith.constant 0 : i32
    %c0_i32_0 = arith.constant 0 : i32
    %c0_i32_1 = arith.constant 0 : i32
    %c0_i32_2 = arith.constant 0 : i32
    %c0_i32_3 = arith.constant 0 : i32
    %0 = tpu.memref_slice %arg0[%c0_i32_2, %c0_i32_3] : memref<6x128xf32, #tpu.memory_space<any>> -> memref<2x128xf32, #tpu.memory_space<any>>
    %c0_i32_4 = arith.constant 0 : i32
    %c0_i32_5 = arith.constant 0 : i32
    %1 = tpu.memref_slice %arg2[%c0_i32, %c0_i32_4, %c0_i32_5] : memref<1x2x256xf32, #tpu.memory_space<vmem>> -> memref<1x2x128xf32, #tpu.memory_space<vmem>>
    %2 = tpu.memref_squeeze %1 : memref<1x2x128xf32, #tpu.memory_space<vmem>> -> memref<2x128xf32, #tpu.memory_space<vmem>>
    %3 = tpu.memref_slice %arg3[%c0_i32_0, %c0_i32_1] : memref<1x2x!tpu.dma_semaphore, #tpu.memory_space<semaphore_mem>> -> memref<1x1x!tpu.dma_semaphore, #tpu.memory_space<semaphore_mem>>
    %4 = tpu.memref_squeeze %3 : memref<1x1x!tpu.dma_semaphore, #tpu.memory_space<semaphore_mem>> -> memref<!tpu.dma_semaphore, #tpu.memory_space<semaphore_mem>>
    tpu.enqueue_dma source(%0 : memref<2x128xf32, #tpu.memory_space<any>>) target(%2 : memref<2x128xf32, #tpu.memory_space<vmem>>) target_semaphore(%4 : memref<!tpu.dma_semaphore, #tpu.memory_space<semaphore_mem>>)
    %c0_i32_6 = arith.constant 0 : i32
    %c0_i32_7 = arith.constant 0 : i32
    %c1_i32 = arith.constant 1 : i32
    %c3_i32 = arith.constant 3 : i32
    %c0_i32_8 = arith.constant 0 : i32
    %5 = tpu.memref_slice %arg0[%c3_i32, %c0_i32_8] : memref<6x128xf32, #tpu.memory_space<any>> -> memref<2x128xf32, #tpu.memory_space<any>>
    %c0_i32_9 = arith.constant 0 : i32
    %c128_i32 = arith.constant 128 : i32
    %6 = tpu.memref_slice %arg2[%c0_i32_6, %c0_i32_9, %c128_i32] : memref<1x2x256xf32, #tpu.memory_space<vmem>> -> memref<1x2x128xf32, #tpu.memory_space<vmem>>
    %7 = tpu.memref_squeeze %6 : memref<1x2x128xf32, #tpu.memory_space<vmem>> -> memref<2x128xf32, #tpu.memory_space<vmem>>
    %8 = tpu.memref_slice %arg3[%c0_i32_7, %c1_i32] : memref<1x2x!tpu.dma_semaphore, #tpu.memory_space<semaphore_mem>> -> memref<1x1x!tpu.dma_semaphore, #tpu.memory_space<semaphore_mem>>
    %9 = tpu.memref_squeeze %8 : memref<1x1x!tpu.dma_semaphore, #tpu.memory_space<semaphore_mem>> -> memref<!tpu.dma_semaphore, #tpu.memory_space<semaphore_mem>>
    tpu.enqueue_dma source(%5 : memref<2x128xf32, #tpu.memory_space<any>>) target(%7 : memref<2x128xf32, #tpu.memory_space<vmem>>) target_semaphore(%9 : memref<!tpu.dma_semaphore, #tpu.memory_space<semaphore_mem>>)
    %c0_i32_10 = arith.constant 0 : i32
    %c0_i32_11 = arith.constant 0 : i32
    %c0_i32_12 = arith.constant 0 : i32
    %c0_i32_13 = arith.constant 0 : i32
    %c0_i32_14 = arith.constant 0 : i32
    %10 = tpu.memref_slice %arg0[%c0_i32_13, %c0_i32_14] : memref<6x128xf32, #tpu.memory_space<any>> -> memref<2x128xf32, #tpu.memory_space<any>>
    %c0_i32_15 = arith.constant 0 : i32
    %c0_i32_16 = arith.constant 0 : i32
    %11 = tpu.memref_slice %arg2[%c0_i32_10, %c0_i32_15, %c0_i32_16] : memref<1x2x256xf32, #tpu.memory_space<vmem>> -> memref<1x2x128xf32, #tpu.memory_space<vmem>>
    %12 = tpu.memref_squeeze %11 : memref<1x2x128xf32, #tpu.memory_space<vmem>> -> memref<2x128xf32, #tpu.memory_space<vmem>>
    %13 = tpu.memref_slice %arg3[%c0_i32_11, %c0_i32_12] : memref<1x2x!tpu.dma_semaphore, #tpu.memory_space<semaphore_mem>> -> memref<1x1x!tpu.dma_semaphore, #tpu.memory_space<semaphore_mem>>
    %14 = tpu.memref_squeeze %13 : memref<1x1x!tpu.dma_semaphore, #tpu.memory_space<semaphore_mem>> -> memref<!tpu.dma_semaphore, #tpu.memory_space<semaphore_mem>>
    tpu.wait_dma2 semaphore(%14 : memref<!tpu.dma_semaphore, #tpu.memory_space<semaphore_mem>>) src(%10 : memref<2x128xf32, #tpu.memory_space<any>>) dst(%12 : memref<2x128xf32, #tpu.memory_space<vmem>>)
    %c0_i32_17 = arith.constant 0 : i32
    %c0_i32_18 = arith.constant 0 : i32
    %c1_i32_19 = arith.constant 1 : i32
    %c3_i32_20 = arith.constant 3 : i32
    %c0_i32_21 = arith.constant 0 : i32
    %15 = tpu.memref_slice %arg0[%c3_i32_20, %c0_i32_21] : memref<6x128xf32, #tpu.memory_space<any>> -> memref<2x128xf32, #tpu.memory_space<any>>
    %c0_i32_22 = arith.constant 0 : i32
    %c128_i32_23 = arith.constant 128 : i32
    %16 = tpu.memref_slice %arg2[%c0_i32_17, %c0_i32_22, %c128_i32_23] : memref<1x2x256xf32, #tpu.memory_space<vmem>> -> memref<1x2x128xf32, #tpu.memory_space<vmem>>
    %17 = tpu.memref_squeeze %16 : memref<1x2x128xf32, #tpu.memory_space<vmem>> -> memref<2x128xf32, #tpu.memory_space<vmem>>
    %18 = tpu.memref_slice %arg3[%c0_i32_18, %c1_i32_19] : memref<1x2x!tpu.dma_semaphore, #tpu.memory_space<semaphore_mem>> -> memref<1x1x!tpu.dma_semaphore, #tpu.memory_space<semaphore_mem>>
    %19 = tpu.memref_squeeze %18 : memref<1x1x!tpu.dma_semaphore, #tpu.memory_space<semaphore_mem>> -> memref<!tpu.dma_semaphore, #tpu.memory_space<semaphore_mem>>
    tpu.wait_dma2 semaphore(%19 : memref<!tpu.dma_semaphore, #tpu.memory_space<semaphore_mem>>) src(%15 : memref<2x128xf32, #tpu.memory_space<any>>) dst(%17 : memref<2x128xf32, #tpu.memory_space<vmem>>)
    %c0_i32_24 = arith.constant 0 : i32
    %c0_i32_25 = arith.constant 0 : i32
    %c0_i32_26 = arith.constant 0 : i32
    %c0_i32_27 = arith.constant 0 : i32
    %20 = tpu.memref_slice %arg2[%c0_i32_24, %c0_i32_26, %c0_i32_27] : memref<1x2x256xf32, #tpu.memory_space<vmem>> -> memref<1x2x256xf32, #tpu.memory_space<vmem>>
    %21 = tpu.memref_squeeze %20 : memref<1x2x256xf32, #tpu.memory_space<vmem>> -> memref<2x256xf32, #tpu.memory_space<vmem>>
    %c0_i32_28 = arith.constant 0 : i32
    %c0_i32_29 = arith.constant 0 : i32
    %22 = tpu.memref_slice %arg1[%c0_i32_28, %c0_i32_29] : memref<2x256xf32, #tpu.memory_space<any>> -> memref<2x256xf32, #tpu.memory_space<any>>
    %23 = tpu.memref_slice %arg4[%c0_i32_25] : memref<1x!tpu.dma_semaphore, #tpu.memory_space<semaphore_mem>> -> memref<1x!tpu.dma_semaphore, #tpu.memory_space<semaphore_mem>>
    %24 = tpu.memref_squeeze %23 : memref<1x!tpu.dma_semaphore, #tpu.memory_space<semaphore_mem>> -> memref<!tpu.dma_semaphore, #tpu.memory_space<semaphore_mem>>
    tpu.enqueue_dma source(%21 : memref<2x256xf32, #tpu.memory_space<vmem>>) target(%22 : memref<2x256xf32, #tpu.memory_space<any>>) target_semaphore(%24 : memref<!tpu.dma_semaphore, #tpu.memory_space<semaphore_mem>>)
    %c0_i32_30 = arith.constant 0 : i32
    %c0_i32_31 = arith.constant 0 : i32
    %c0_i32_32 = arith.constant 0 : i32
    %c0_i32_33 = arith.constant 0 : i32
    %25 = tpu.memref_slice %arg2[%c0_i32_30, %c0_i32_32, %c0_i32_33] : memref<1x2x256xf32, #tpu.memory_space<vmem>> -> memref<1x2x256xf32, #tpu.memory_space<vmem>>
    %26 = tpu.memref_squeeze %25 : memref<1x2x256xf32, #tpu.memory_space<vmem>> -> memref<2x256xf32, #tpu.memory_space<vmem>>
    %c0_i32_34 = arith.constant 0 : i32
    %c0_i32_35 = arith.constant 0 : i32
    %27 = tpu.memref_slice %arg1[%c0_i32_34, %c0_i32_35] : memref<2x256xf32, #tpu.memory_space<any>> -> memref<2x256xf32, #tpu.memory_space<any>>
    %28 = tpu.memref_slice %arg4[%c0_i32_31] : memref<1x!tpu.dma_semaphore, #tpu.memory_space<semaphore_mem>> -> memref<1x!tpu.dma_semaphore, #tpu.memory_space<semaphore_mem>>
    %29 = tpu.memref_squeeze %28 : memref<1x!tpu.dma_semaphore, #tpu.memory_space<semaphore_mem>> -> memref<!tpu.dma_semaphore, #tpu.memory_space<semaphore_mem>>
    tpu.wait_dma2 semaphore(%29 : memref<!tpu.dma_semaphore, #tpu.memory_space<semaphore_mem>>) src(%26 : memref<2x256xf32, #tpu.memory_space<vmem>>) dst(%27 : memref<2x256xf32, #tpu.memory_space<any>>)
    return
  }
}

</mosaic_0001>

<llo_original>
// kernel: tpu_custom_call.1
$region0: #{tpu_custom_call.1}
  #allocation0 [shape = 'u32[]', space=smem, size = 0x4, offset = 0x4, fixed_abs, tag = 'smem constant byte address 0x4 - core index']
  #allocation1 [shape = 'u32[144,128]{1,0:T(1,128)}', space=vmem, size = 0x12000, scoped, tag = 'internal scratch']
  #allocation2 [shape = 'f32[1,2,256]{2,1,0:T(2,128)}', space=vmem, size = 0x800, scoped, tag = 'scratch operand']
  #allocation3 [shape = 's32[2]{0}', space=sflag, size = 0x8, scoped, tag = 'scratch operand']
  #allocation4 [shape = 's32[1]{0}', space=sflag, size = 0x4, scoped, tag = 'scratch operand']
  #allocation5 [shape = 's32[]', space=sflag, size = 0x4, offset = 0, fixed_abs, tag = 'sflag constant byte address 0x0 - dummy sync flag']
  #allocation6 [shape = 's32[]', space=sflag, size = 0x4, offset = 0, fixed_abs, tag = 'sflag constant byte address 0x0 - dummy sync flag']
  #allocation7 [shape = 'u32[]', space=smem, size = 0x4, offset = 0x44, fixed_abs, tag = 'smem constant byte address 0x44 - assertion arg 0']
  #allocation8 [shape = 'u32[]', space=smem, size = 0x4, offset = 0x48, fixed_abs, tag = 'smem constant byte address 0x48 - assertion arg 1']
  #allocation9 [shape = 's32[]', space=sflag, size = 0x4, offset = 0, fixed_abs, tag = 'sflag constant byte address 0x0 - dummy sync flag']
  #allocation10 [shape = 's32[]', space=sflag, size = 0x4, offset = 0, fixed_abs, tag = 'sflag constant byte address 0x0 - dummy sync flag']
  #allocation11 [shape = 's32[]', space=sflag, size = 0x4, offset = 0, fixed_abs, tag = 'sflag constant byte address 0x0 - dummy sync flag']
  #allocation12 [shape = 's32[]', space=sflag, size = 0x4, offset = 0, fixed_abs, tag = 'sflag constant byte address 0x0 - dummy sync flag']
  %s0 = inlined_call_operand.hbm [shape: f32[6,128], index: 0, kind: input, shape index: {}]
  %s1 = inlined_call_operand.hbm [shape: f32[2,256], index: 1, kind: output, shape index: {}]
  %s2 = sld [smem:[#allocation0]]
  $region14: #{tpu_custom_call.1} parent=0
    _
  %s4 = ssub.s32 1, %s2
  %s5 = scalar_select 0, %s4, %s2
  // Predicated region
  $region2: #{tpu_custom_call.1} parent=0 // pred_check
    _
  $region3: #{tpu_custom_call.1} parent=0 // pred_check_branch
    %7 = sbr.rel target = $region5
  $region4: #{tpu_custom_call.1} parent=0 // pred_region
    %8 = sst [smem:[#allocation7]] [#allocation6]
    %9 = sst [smem:[#allocation8]] [#allocation5]
  $region5: #{tpu_custom_call.1} parent=0 // pred_fallthru
    _
  %11 = shalt.err (0)
  %s13 = sshll.u32 [#allocation2], 4
  %s14 = int_to_ptr.vmem [resolvable:$true] %s13
  %16 = dma.hbm_to_vmem [thread:$0]  %s0, 32, %s14, [#allocation3]
  %s17 = scalar_lea.hbm %s0, 48
  %s18 = scalar_lea.vmem [#allocation2], 2
  %s19 = scalar_lea.sflag [#allocation3], 1
  // Predicated region
  $region6: #{tpu_custom_call.1} parent=0 // pred_check
    _
  $region7: #{tpu_custom_call.1} parent=0 // pred_check_branch
    %21 = sbr.rel target = $region9
  $region8: #{tpu_custom_call.1} parent=0 // pred_region
    %22 = sst [smem:[#allocation7]] [#allocation10]
    %23 = sst [smem:[#allocation8]] [#allocation9]
  $region9: #{tpu_custom_call.1} parent=0 // pred_fallthru
    _
  %25 = shalt.err (0)
  %s27 = sshll.u32 %s18, 4
  %s28 = int_to_ptr.vmem [resolvable:$true] %s27
  %30 = dma.hbm_to_vmem [thread:$0]  %s17, 32, %s28, %s19
  %s31 = smul.u32 2, 1
  %s32 = smul.u32 %s31, 1
  %s33 = sshll.u32 %s32, 4
  %34 = dma.done [#allocation3], %s33
  %s35 = sshll.u32 %s32, 4
  %36 = dma.done %s19, %s35
  // Predicated region
  $region10: #{tpu_custom_call.1} parent=0 // pred_check
    _
  $region11: #{tpu_custom_call.1} parent=0 // pred_check_branch
    %38 = sbr.rel target = $region13
  $region12: #{tpu_custom_call.1} parent=0 // pred_region
    %39 = sst [smem:[#allocation7]] [#allocation12]
    %40 = sst [smem:[#allocation8]] [#allocation11]
  $region13: #{tpu_custom_call.1} parent=0 // pred_fallthru
    _
  %42 = shalt.err (0)
  %s44 = sshll.u32 [#allocation2], 4
  %s45 = int_to_ptr.vmem [resolvable:$true] %s44
  %47 = dma.vmem_to_hbm [thread:$0]  %s45, 64, %s1, [#allocation4]
  %s48 = smul.u32 %s31, 2
  %s49 = sshll.u32 %s48, 4
  %50 = dma.done [#allocation4], %s49
  %51 = vsyncmov [#allocation3]
  %s52 = vpop.sfrf %51
  %p53 = scmp.eq.s32.totalorder %s52, 0
  %p54 = pneg %p53
  %56 = shalt.err (%p54)
  %s57 = scalar_lea.sflag [#allocation3], 1
  %58 = vsyncmov %s57
  %s59 = vpop.sfrf %58
  %p60 = scmp.eq.s32.totalorder %s59, 0
  %p61 = pneg %p60
  %63 = shalt.err (%p61)
  %64 = vsyncmov [#allocation4]
  %s65 = vpop.sfrf %64
  %p66 = scmp.eq.s32.totalorder %s65, 0
  %p67 = pneg %p66
  %69 = shalt.err (%p67)

</llo_original>
